<compile_context>
chip_gen: v7x
topology: tpu7x:2x2x1
jax: 0.10.0
libtpu: 0.0.40
codegen_flags: <defaults>
</compile_context>

<pallas_src>
import functools

import numpy as np
import jax
import jax.numpy as jnp
from jax import lax
from jax.experimental import pallas as pl
from jax.experimental.pallas import tpu as pltpu

NUM_CORNERS = 4


def _round_up(x, m):
    return ((x + m - 1) // m) * m


# ---------------------------------------------------------------------------
# Pallas kernel: weighted-selection matmul (grid_sample) + 2-layer MLP + L2 norm
# ---------------------------------------------------------------------------
def _select_mlp_norm_kernel(idx_ref,                      # VMEM (tS, 4)  int32 corner flat-indices
                            wts_ref,                      # VMEM (tS, 4)  f32   corner weights
                            feat_ref,                     # VMEM (P,  C)  compute_dtype feature slab
                            w1_ref, b1_ref,               # VMEM (C, ncp) / (1, ncp)
                            w2_ref, b2_ref,               # VMEM (nc, ncp) / (1, ncp)
                            o_ref,                        # VMEM (tS, ncp) f32
                            *, nc):
    tS, K = idx_ref.shape
    P, _ = feat_ref.shape

    # --- grid_sample as a weighted selection matrix (VPU build, MXU matmul) ----
    idx = idx_ref[...]                                    # (tS, 4) int32
    w = wts_ref[...]                                      # (tS, 4) f32
    iota_p = lax.broadcasted_iota(jnp.int32, (tS, P), 1)  # lane iota over P
    sel = jnp.zeros((tS, P), jnp.float32)
    for k in range(K):                                    # static unroll (4 corners)
        sel = sel + jnp.where(idx[:, k:k + 1] == iota_p, w[:, k:k + 1], 0.0)

    feat = feat_ref[...]                                  # (P, C), bf16 or f32
    sampled = jnp.dot(sel.astype(feat.dtype), feat,
                      preferred_element_type=jnp.float32)  # (tS, C) f32 accumulate

    # --- 2-layer MLP (MXU) + ReLU ---------------------------------------------
    h = jnp.dot(sampled.astype(w1_ref.dtype), w1_ref[...],
                preferred_element_type=jnp.float32) + b1_ref[...]
    h = jnp.maximum(h, 0.0)
    # W2 is only padded on the output dim; contract over the real nc columns.
    y = jnp.dot(h[:, :nc].astype(w2_ref.dtype), w2_ref[...],
                preferred_element_type=jnp.float32) + b2_ref[...]

    # --- Normalize(2): zero-padded lanes contribute 0 to the norm --------------
    denom = jnp.sqrt(jnp.sum(y * y, axis=-1, keepdims=True)) + 1e-7
    inv = pl.reciprocal(denom, approx=True)               # EUP
    inv = inv * (2.0 - denom * inv)                       # one Newton step -> ~f32 accuracy
    o_ref[...] = (y * inv).astype(o_ref.dtype)


def sample_mlp_norm(idx, wts, feat_pc, w1, b1, w2, b2, *,
                    s_chunk=512, compute_dtype=jnp.bfloat16, vmem_limit_bytes=None):
    """idx: [B,S,4] int32 flat indices into P; wts: [B,S,4] f32 corner weights;
    feat_pc: [B,P,C]. Returns [B,S,nc] f32 (nc = w2.shape[1])."""
    B, S, _ = idx.shape
    _, P, C = feat_pc.shape
    nc = w2.shape[1]
    ncp = _round_up(max(nc, 128), 128)                    # lane-dense MLP/output width

    # ---- S chunking / padding (second grid axis; tS multiple of 8) ------------
    S8 = _round_up(S, 8)
    tS = min(S8, _round_up(s_chunk, 8))
    S_pad = _round_up(S8, tS)
    if S_pad != S:
        pad = S_pad - S
        idx = jnp.pad(idx, ((0, 0), (0, pad), (0, 0)))    # padded rows: idx 0, weight 0
        wts = jnp.pad(wts, ((0, 0), (0, pad), (0, 0)))
    num_s_chunks = S_pad // tS

    # ---- parameter padding: W1/W2 only on the output dim ----------------------
    w1p = jnp.pad(w1, ((0, 0), (0, ncp - nc))).astype(compute_dtype)   # (C,  ncp)
    b1p = jnp.pad(b1, ((0, 0), (0, ncp - nc))).astype(jnp.float32)     # (1,  ncp)
    w2p = jnp.pad(w2, ((0, 0), (0, ncp - nc))).astype(compute_dtype)   # (nc, ncp)
    b2p = jnp.pad(b2, ((0, 0), (0, ncp - nc))).astype(jnp.float32)     # (1,  ncp)

    idx = idx.astype(jnp.int32)
    wts = wts.astype(jnp.float32)
    feat_c = feat_pc.astype(compute_dtype)                # bf16 slab by default

    # ---- explicit VMEM budget (review: forward() must set it) -----------------
    if vmem_limit_bytes is None:
        item = jnp.dtype(compute_dtype).itemsize
        feat_bytes = P * C * item                         # slab (double-buffered by BlockSpec)
        sel_bytes = tS * P * 4                            # in-kernel selection matrix
        io_bytes = tS * (NUM_CORNERS * 8 + ncp * 4)       # idx + wts + out blocks
        par_bytes = (C * ncp + nc * ncp) * item + 2 * ncp * 4
        est = (2 * feat_bytes + 2 * io_bytes + 2 * par_bytes
               + sel_bytes + 4 * tS * ncp * 4 + (8 << 20))
        # clamp to [32 MiB, 64 MiB]: valid on v7x (64 MiB physical) and above the
        # default scoped limit on v5e/v6e.
        vmem_limit_bytes = int(min(max(est, 32 << 20), 64 << 20))

    kernel = functools.partial(_select_mlp_norm_kernel, nc=nc)

    grid_spec = pltpu.PrefetchScalarGridSpec(
        num_scalar_prefetch=0,
        grid=(B, num_s_chunks),
        in_specs=[
            pl.BlockSpec((None, tS, NUM_CORNERS), lambda b, s: (b, s, 0)),   # idx
            pl.BlockSpec((None, tS, NUM_CORNERS), lambda b, s: (b, s, 0)),   # wts
            pl.BlockSpec((None, P, C), lambda b, s: (b, 0, 0)),              # feat slab (resident over s)
            pl.BlockSpec((C, ncp), lambda b, s: (0, 0)),                     # W1
            pl.BlockSpec((1, ncp), lambda b, s: (0, 0)),                     # b1
            pl.BlockSpec((nc, ncp), lambda b, s: (0, 0)),                    # W2 (out-dim padded only)
            pl.BlockSpec((1, ncp), lambda b, s: (0, 0)),                     # b2
        ],
        out_specs=pl.BlockSpec((None, tS, ncp), lambda b, s: (b, s, 0)),
    )

    out = pl.pallas_call(
        kernel,
        out_shape=jax.ShapeDtypeStruct((B, S_pad, ncp), jnp.float32),
        grid_spec=grid_spec,
        compiler_params=pltpu.CompilerParams(
            dimension_semantics=("parallel", "parallel"),  # B x S-chunks shard across v7x TCs
            vmem_limit_bytes=vmem_limit_bytes,
        ),
    )(idx, wts, feat_c, w1p, b1p, w2p, b2p)
    # TODO(synk): downstream could consume the padded (ncp) array directly and
    #             slice lazily to avoid this extra pass (low priority).
    return out[:, :S, :nc]


# ---------------------------------------------------------------------------
# Glue: grid_sample corners (align_corners=True, zeros padding) as sparse idx/w
# ---------------------------------------------------------------------------
def grid_to_corners(grids, H, W, mode):
    """grids: [B,1,S,2] with (x, y) in [-1, 1]. Returns idx [B,S,4] i32, w [B,S,4] f32."""
    g = grids[:, 0]                                        # [B, S, 2]
    ix = (g[..., 0] + 1.0) * 0.5 * (W - 1)                 # align_corners=True (as in the module)
    iy = (g[..., 1] + 1.0) * 0.5 * (H - 1)
    if mode == "bilinear":
        x0 = jnp.floor(ix); x1 = x0 + 1.0
        y0 = jnp.floor(iy); y1 = y0 + 1.0
        wx1 = ix - x0; wx0 = 1.0 - wx1
        wy1 = iy - y0; wy0 = 1.0 - wy1
        cxs = [x0, x1, x0, x1]
        cys = [y0, y0, y1, y1]
        cws = [wx0 * wy0, wx1 * wy0, wx0 * wy1, wx1 * wy1]
    else:  # nearest
        # TODO(synk): jnp.round is half-to-even; PyTorch nearest rounding may differ exactly on .5
        xr = jnp.round(ix); yr = jnp.round(iy)
        z = jnp.zeros_like(ix); one = jnp.ones_like(ix)
        cxs = [xr, z, z, z]
        cys = [yr, z, z, z]
        cws = [one, z, z, z]                               # dummy corners carry weight 0

    idxs, ws = [], []
    for cx, cy, w in zip(cxs, cys, cws):
        valid = (cx >= 0) & (cx <= W - 1) & (cy >= 0) & (cy <= H - 1)
        w = jnp.where(valid, w, 0.0)                       # zeros padding mode
        flat = (jnp.clip(cy, 0, H - 1).astype(jnp.int32) * W
                + jnp.clip(cx, 0, W - 1).astype(jnp.int32))
        idxs.append(flat); ws.append(w)
    return jnp.stack(idxs, axis=-1), jnp.stack(ws, axis=-1)


def make_grids_from_mask(mask_np, num_patches, rng_key):
    """Replicates the pos_grids/neg_grids construction (torch.where + randint).
    TODO(synk): ragged torch.where has no clean Pallas equivalent; kept as host glue."""
    B, H, W = mask_np.shape
    counts = mask_np.reshape(B, -1).sum(axis=1)
    if int(counts.min()) == 0:
        raise ValueError("mask with zero selected pixels cannot be sampled "
                         "(matches torch.randint(high=0) failure in the original).")
    num_samples = int(counts.min())
    if num_patches != -1:
        num_samples = min(num_samples, num_patches)
    grids = []
    for b in range(B):
        ys, xs = np.where(mask_np[b])
        gy = 2.0 * (ys.astype(np.float32) / (H - 1)) - 1.0
        gx = 2.0 * (xs.astype(np.float32) / (W - 1)) - 1.0
        grid = np.stack([gx, gy], axis=-1)
        if num_patches != -1:
            key = jax.random.fold_in(rng_key, b)
            sel = np.asarray(jax.random.randint(key, (num_samples,), 0, grid.shape[0]))
            grid = grid[sel]
        else:
            # PyTorch would try to stack ragged per-batch grids; truncate to the min count.
            grid = grid[:num_samples]
        grids.append(grid)
    return jnp.asarray(np.stack(grids, axis=0), jnp.float32)[:, None, ...]  # [B,1,S,2]


# ---------------------------------------------------------------------------
# Module wrapper
# ---------------------------------------------------------------------------
class MaskInformedSampleFPallas:
    def __init__(self, nc=32, init_gain=0.02, use_mlp=True, compute_dtype=jnp.bfloat16):
        self.nc = nc
        self.init_gain = init_gain
        self.use_mlp = use_mlp
        self.compute_dtype = compute_dtype
        self.mlp_init = False
        self.mlps = {}

    def create_mlp(self, feats, key):
        for mlp_id, feat in enumerate(feats):
            input_nc = feat.shape[1]
            k1, k2, key = jax.random.split(key, 3)
            w1 = self.init_gain * jax.random.normal(k1, (input_nc, self.nc), jnp.float32)
            b1 = jnp.zeros((1, self.nc), jnp.float32)
            w2 = self.init_gain * jax.random.normal(k2, (self.nc, self.nc), jnp.float32)
            b2 = jnp.zeros((1, self.nc), jnp.float32)
            self.mlps[mlp_id] = (w1, b1, w2, b2)
        self.mlp_init = True

    def forward(self, feats, num_patches=-1, masks=None, pos_grids=None,
                neg_grids=None, rng_key=None):
        if self.use_mlp and not self.mlp_init:
            self.create_mlp(feats, jax.random.PRNGKey(42))
        if rng_key is None:
            rng_key = jax.random.PRNGKey(0)

        if masks is not None:
            masks = masks[:, 0, :, :]
        masks_np = np.asarray(masks).astype(bool)

        if pos_grids is None:
            pos_grids = make_grids_from_mask(masks_np, num_patches,
                                             jax.random.fold_in(rng_key, 0))
        if neg_grids is None:
            neg_grids = make_grids_from_mask(~masks_np, num_patches,
                                             jax.random.fold_in(rng_key, 1))
        s_pos = pos_grids.shape[2]

        pos_feats, neg_feats = [], []
        for feat_id, feat in enumerate(feats):
            B, C, H, W = feat.shape
            feat_pc = jnp.transpose(feat, (0, 2, 3, 1)).reshape(B, H * W, C)   # [B,P,C]
            w1, b1, w2, b2 = self.mlps[feat_id]

            # sparse corner representation of grid_sample (<=4 nonzeros per sample)
            idx_pos, w_pos = grid_to_corners(pos_grids, H, W, "bilinear")
            idx_neg, w_neg = grid_to_corners(neg_grids, H, W, "nearest")

            # fuse pos + neg into one pallas_call: feat slab & MLP weights loaded once per batch
            idx_all = jnp.concatenate([idx_pos, idx_neg], axis=1)              # [B, Sp+Sn, 4]
            w_all = jnp.concatenate([w_pos, w_neg], axis=1)

            out = sample_mlp_norm(idx_all, w_all, feat_pc, w1, b1, w2, b2,
                                  compute_dtype=self.compute_dtype)            # [B, Sp+Sn, nc]
            pos_feats.append(out[:, :s_pos])
            neg_feats.append(out[:, s_pos:])

        return pos_feats, neg_feats, pos_grids, neg_grids


# ---------------------------------------------------------------------------
# Pure-JAX reference (same math, no Pallas) for correctness check
# ---------------------------------------------------------------------------
def _ref(idx, w, feat_pc, w1, b1, w2, b2):
    B, S, K = idx.shape
    C = feat_pc.shape[-1]
    gathered = jnp.take_along_axis(feat_pc, idx.reshape(B, S * K)[:, :, None], axis=1)
    gathered = gathered.reshape(B, S, K, C)
    sampled = jnp.sum(w[..., None] * gathered, axis=2)          # [B,S,C]
    h = jnp.maximum(sampled @ w1 + b1, 0.0)
    y = h @ w2 + b2
    norm = jnp.sqrt(jnp.sum(y * y, axis=-1, keepdims=True))
    return y / (norm + 1e-7)


if __name__ == "__main__":
    key = jax.random.PRNGKey(0)
    B, C, H, W = 2, 4, 16, 16
    num_patches = 8

    kf, km, kr = jax.random.split(key, 3)
    feat = jax.random.normal(kf, (B, C, H, W), jnp.float32)       # NCHW
    masks = (jax.random.uniform(km, (B, 1, H, W)) > 0.5)          # [B,1,H,W] bool

    model = MaskInformedSampleFPallas(nc=32, use_mlp=True)        # default bf16 compute path
    pos_feats, neg_feats, pos_grids, neg_grids = model.forward(
        [feat], num_patches=num_patches, masks=masks, rng_key=kr)

    jax.block_until_ready(pos_feats)
    jax.block_until_ready(neg_feats)

    # ---- correctness checks against a pure-JAX f32 reference -----------------
    feat_pc = jnp.transpose(feat, (0, 2, 3, 1)).reshape(B, H * W, C)
    w1, b1, w2, b2 = model.mlps[0]
    idx_pos, w_pos = grid_to_corners(pos_grids, H, W, "bilinear")
    idx_neg, w_neg = grid_to_corners(neg_grids, H, W, "nearest")
    ref_pos = _ref(idx_pos, w_pos, feat_pc, w1, b1, w2, b2)
    ref_neg = _ref(idx_neg, w_neg, feat_pc, w1, b1, w2, b2)

    # (1) default bf16 slab/matmul path: loose tolerance (intentional precision trade)
    np.testing.assert_allclose(np.asarray(pos_feats[0]), np.asarray(ref_pos),
                               rtol=5e-2, atol=1.5e-2)
    np.testing.assert_allclose(np.asarray(neg_feats[0]), np.asarray(ref_neg),
                               rtol=5e-2, atol=1.5e-2)

    # (2) f32 compute path: tight tolerance validates the kernel math exactly
    idx_all = jnp.concatenate([idx_pos, idx_neg], axis=1)
    w_all = jnp.concatenate([w_pos, w_neg], axis=1)
    out32 = sample_mlp_norm(idx_all, w_all, feat_pc, w1, b1, w2, b2,
                            compute_dtype=jnp.float32)
    s_pos = idx_pos.shape[1]
    np.testing.assert_allclose(np.asarray(out32[:, :s_pos]), np.asarray(ref_pos),
                               rtol=1e-3, atol=1e-4)
    np.testing.assert_allclose(np.asarray(out32[:, s_pos:]), np.asarray(ref_neg),
                               rtol=1e-3, atol=1e-4)

    assert pos_feats[0].shape == (B, num_patches, 32)
    assert neg_feats[0].shape == (B, num_patches, 32)
    print("KERNEL_OK")
</pallas_src>

<mosaic_0001>
module attributes {stable_mosaic.version = 11 : i64} {
  func.func @_select_mlp_norm_kernel(%arg0: i32, %arg1: i32, %arg2: memref<1x16x4xi32, #tpu.memory_space<vmem>>, %arg3: memref<1x16x4xf32, #tpu.memory_space<vmem>>, %arg4: memref<1x256x4xbf16, #tpu.memory_space<vmem>>, %arg5: memref<4x128xbf16, #tpu.memory_space<vmem>>, %arg6: memref<1x128xf32, #tpu.memory_space<vmem>>, %arg7: memref<32x128xbf16, #tpu.memory_space<vmem>>, %arg8: memref<1x128xf32, #tpu.memory_space<vmem>>, %arg9: memref<1x16x128xf32, #tpu.memory_space<vmem>>) attributes {dimension_semantics = [#tpu.dimension_semantics<parallel>, #tpu.dimension_semantics<parallel>], iteration_bounds = array<i64: 2, 1>, scalar_prefetch = 0 : i64, scratch_operands = 0 : i64, tpu.core_type = #tpu.core_type<tc>, window_params = [{transform_indices = @transform_0, window_bounds = array<i64: 1, 16, 4>}, {transform_indices = @transform_1, window_bounds = array<i64: 1, 16, 4>}, {transform_indices = @transform_2, window_bounds = array<i64: 1, 256, 4>}, {pipeline_mode = #tpu.pipeline_mode<synchronous>, transform_indices = @transform_3, window_bounds = array<i64: 4, 128>}, {pipeline_mode = #tpu.pipeline_mode<synchronous>, transform_indices = @transform_4, window_bounds = array<i64: 1, 128>}, {pipeline_mode = #tpu.pipeline_mode<synchronous>, transform_indices = @transform_5, window_bounds = array<i64: 32, 128>}, {pipeline_mode = #tpu.pipeline_mode<synchronous>, transform_indices = @transform_6, window_bounds = array<i64: 1, 128>}, {transform_indices = @transform_7, window_bounds = array<i64: 1, 16, 128>}]} {
    %c0 = arith.constant 0 : index
    %c0_0 = arith.constant 0 : index
    %c0_1 = arith.constant 0 : index
    %0 = vector.load %arg2[%c0, %c0_0, %c0_1] : memref<1x16x4xi32, #tpu.memory_space<vmem>>, vector<1x16x4xi32>
    %1 = vector.shape_cast %0 : vector<1x16x4xi32> to vector<16x4xi32>
    %c0_2 = arith.constant 0 : index
    %c0_3 = arith.constant 0 : index
    %c0_4 = arith.constant 0 : index
    %2 = vector.load %arg3[%c0_2, %c0_3, %c0_4] : memref<1x16x4xf32, #tpu.memory_space<vmem>>, vector<1x16x4xf32>
    %3 = vector.shape_cast %2 : vector<1x16x4xf32> to vector<16x4xf32>
    %4 = tpu.iota {dimensions = array<i32: 1>} : vector<16x256xi32>
    %cst = arith.constant 0.000000e+00 : f32
    %5 = vector.broadcast %cst : f32 to vector<16x256xf32>
    %6 = vector.extract_strided_slice %1 {offsets = [0, 0], sizes = [16, 1], strides = [1, 1]} : vector<16x4xi32> to vector<16x1xi32>
    %7 = vector.broadcast %6 : vector<16x1xi32> to vector<16x256xi32>
    %8 = arith.cmpi eq, %7, %4 : vector<16x256xi32>
    %9 = vector.extract_strided_slice %3 {offsets = [0, 0], sizes = [16, 1], strides = [1, 1]} : vector<16x4xf32> to vector<16x1xf32>
    %cst_5 = arith.constant 0.000000e+00 : f32
    %10 = vector.shape_cast %9 : vector<16x1xf32> to vector<16x1xf32>
    %11 = vector.broadcast %10 : vector<16x1xf32> to vector<16x256xf32>
    %12 = vector.broadcast %cst_5 : f32 to vector<16x256xf32>
    %13 = arith.select %8, %11, %12 : vector<16x256xi1>, vector<16x256xf32>
    %14 = arith.addf %5, %13 : vector<16x256xf32>
    %15 = vector.extract_strided_slice %1 {offsets = [0, 1], sizes = [16, 1], strides = [1, 1]} : vector<16x4xi32> to vector<16x1xi32>
    %16 = vector.broadcast %15 : vector<16x1xi32> to vector<16x256xi32>
    %17 = arith.cmpi eq, %16, %4 : vector<16x256xi32>
    %18 = vector.extract_strided_slice %3 {offsets = [0, 1], sizes = [16, 1], strides = [1, 1]} : vector<16x4xf32> to vector<16x1xf32>
    %cst_6 = arith.constant 0.000000e+00 : f32
    %19 = vector.shape_cast %18 : vector<16x1xf32> to vector<16x1xf32>
    %20 = vector.broadcast %19 : vector<16x1xf32> to vector<16x256xf32>
    %21 = vector.broadcast %cst_6 : f32 to vector<16x256xf32>
    %22 = arith.select %17, %20, %21 : vector<16x256xi1>, vector<16x256xf32>
    %23 = arith.addf %14, %22 : vector<16x256xf32>
    %24 = vector.extract_strided_slice %1 {offsets = [0, 2], sizes = [16, 1], strides = [1, 1]} : vector<16x4xi32> to vector<16x1xi32>
    %25 = vector.broadcast %24 : vector<16x1xi32> to vector<16x256xi32>
    %26 = arith.cmpi eq, %25, %4 : vector<16x256xi32>
    %27 = vector.extract_strided_slice %3 {offsets = [0, 2], sizes = [16, 1], strides = [1, 1]} : vector<16x4xf32> to vector<16x1xf32>
    %cst_7 = arith.constant 0.000000e+00 : f32
    %28 = vector.shape_cast %27 : vector<16x1xf32> to vector<16x1xf32>
    %29 = vector.broadcast %28 : vector<16x1xf32> to vector<16x256xf32>
    %30 = vector.broadcast %cst_7 : f32 to vector<16x256xf32>
    %31 = arith.select %26, %29, %30 : vector<16x256xi1>, vector<16x256xf32>
    %32 = arith.addf %23, %31 : vector<16x256xf32>
    %33 = vector.extract_strided_slice %1 {offsets = [0, 3], sizes = [16, 1], strides = [1, 1]} : vector<16x4xi32> to vector<16x1xi32>
    %34 = vector.broadcast %33 : vector<16x1xi32> to vector<16x256xi32>
    %35 = arith.cmpi eq, %34, %4 : vector<16x256xi32>
    %36 = vector.extract_strided_slice %3 {offsets = [0, 3], sizes = [16, 1], strides = [1, 1]} : vector<16x4xf32> to vector<16x1xf32>
    %cst_8 = arith.constant 0.000000e+00 : f32
    %37 = vector.shape_cast %36 : vector<16x1xf32> to vector<16x1xf32>
    %38 = vector.broadcast %37 : vector<16x1xf32> to vector<16x256xf32>
    %39 = vector.broadcast %cst_8 : f32 to vector<16x256xf32>
    %40 = arith.select %35, %38, %39 : vector<16x256xi1>, vector<16x256xf32>
    %41 = arith.addf %32, %40 : vector<16x256xf32>
    %c0_9 = arith.constant 0 : index
    %c0_10 = arith.constant 0 : index
    %c0_11 = arith.constant 0 : index
    %42 = vector.load %arg4[%c0_9, %c0_10, %c0_11] : memref<1x256x4xbf16, #tpu.memory_space<vmem>>, vector<1x256x4xbf16>
    %43 = vector.shape_cast %42 : vector<1x256x4xbf16> to vector<256x4xbf16>
    %44 = arith.truncf %41 : vector<16x256xf32> to vector<16x256xbf16>
    %cst_12 = arith.constant dense<0.000000e+00> : vector<16x4xf32>
    %45 = tpu.matmul %44, %43, %cst_12 {dimension_numbers = #tpu.dot_dimension_numbers<[1], [0], [0], [1], [0, 0, 1, 1], [], []>} : vector<16x256xbf16>, vector<256x4xbf16>, vector<16x4xf32> -> vector<16x4xf32>
    %46 = arith.truncf %45 : vector<16x4xf32> to vector<16x4xbf16>
    %c0_13 = arith.constant 0 : index
    %c0_14 = arith.constant 0 : index
    %47 = vector.load %arg5[%c0_13, %c0_14] : memref<4x128xbf16, #tpu.memory_space<vmem>>, vector<4x128xbf16>
    %cst_15 = arith.constant dense<0.000000e+00> : vector<16x128xf32>
    %48 = tpu.matmul %46, %47, %cst_15 {dimension_numbers = #tpu.dot_dimension_numbers<[1], [0], [0], [1], [0, 0, 1, 1], [], []>} : vector<16x4xbf16>, vector<4x128xbf16>, vector<16x128xf32> -> vector<16x128xf32>
    %c0_16 = arith.constant 0 : index
    %c0_17 = arith.constant 0 : index
    %49 = vector.load %arg6[%c0_16, %c0_17] : memref<1x128xf32, #tpu.memory_space<vmem>>, vector<1x128xf32>
    %50 = vector.broadcast %49 : vector<1x128xf32> to vector<16x128xf32>
    %51 = arith.addf %48, %50 : vector<16x128xf32>
    %cst_18 = arith.constant 0.000000e+00 : f32
    %52 = vector.broadcast %cst_18 : f32 to vector<16x128xf32>
    %53 = arith.maximumf %51, %52 : vector<16x128xf32>
    %54 = vector.extract_strided_slice %53 {offsets = [0, 0], sizes = [16, 32], strides = [1, 1]} : vector<16x128xf32> to vector<16x32xf32>
    %55 = arith.truncf %54 : vector<16x32xf32> to vector<16x32xbf16>
    %c0_19 = arith.constant 0 : index
    %c0_20 = arith.constant 0 : index
    %56 = vector.load %arg7[%c0_19, %c0_20] : memref<32x128xbf16, #tpu.memory_space<vmem>>, vector<32x128xbf16>
    %cst_21 = arith.constant dense<0.000000e+00> : vector<16x128xf32>
    %57 = tpu.matmul %55, %56, %cst_21 {dimension_numbers = #tpu.dot_dimension_numbers<[1], [0], [0], [1], [0, 0, 1, 1], [], []>} : vector<16x32xbf16>, vector<32x128xbf16>, vector<16x128xf32> -> vector<16x128xf32>
    %c0_22 = arith.constant 0 : index
    %c0_23 = arith.constant 0 : index
    %58 = vector.load %arg8[%c0_22, %c0_23] : memref<1x128xf32, #tpu.memory_space<vmem>>, vector<1x128xf32>
    %59 = vector.broadcast %58 : vector<1x128xf32> to vector<16x128xf32>
    %60 = arith.addf %57, %59 : vector<16x128xf32>
    %61 = arith.mulf %60, %60 : vector<16x128xf32>
    %cst_24 = arith.constant dense<0.000000e+00> : vector<16xf32>
    %62 = vector.multi_reduction <add>, %61, %cst_24 [1] : vector<16x128xf32> to vector<16xf32>
    %63 = vector.shape_cast %62 : vector<16xf32> to vector<16x1xf32>
    %64 = math.sqrt %63 : vector<16x1xf32>
    %cst_25 = arith.constant 1.000000e-07 : f32
    %65 = vector.broadcast %cst_25 : f32 to vector<16x1xf32>
    %66 = arith.addf %64, %65 : vector<16x1xf32>
    %67 = tpu.reciprocal %66 {approx = true} : vector<16x1xf32> -> vector<16x1xf32>
    %68 = arith.mulf %66, %67 : vector<16x1xf32>
    %cst_26 = arith.constant 2.000000e+00 : f32
    %69 = vector.broadcast %cst_26 : f32 to vector<16x1xf32>
    %70 = arith.subf %69, %68 : vector<16x1xf32>
    %71 = arith.mulf %67, %70 : vector<16x1xf32>
    %72 = vector.broadcast %71 : vector<16x1xf32> to vector<16x128xf32>
    %73 = arith.mulf %60, %72 : vector<16x128xf32>
    %c0_27 = arith.constant 0 : index
    %c0_28 = arith.constant 0 : index
    %c0_29 = arith.constant 0 : index
    %74 = vector.load %arg9[%c0_27, %c0_28, %c0_29] : memref<1x16x128xf32, #tpu.memory_space<vmem>>, vector<1x16x128xf32>
    %75 = vector.shape_cast %74 : vector<1x16x128xf32> to vector<16x128xf32>
    %76 = vector.shape_cast %73 : vector<16x128xf32> to vector<1x16x128xf32>
    tpu.vector_store %arg9[%c0_27, %c0_28, %c0_29], %76 {strides = array<i32>} : memref<1x16x128xf32, #tpu.memory_space<vmem>>, vector<1x16x128xf32>,
    return
  }
  func.func @transform_0(%arg0: i32, %arg1: i32) -> (i32, i32, i32) {
    %c0_i32 = arith.constant 0 : i32
    %c0_i32_0 = arith.constant 0 : i32
    return %arg0, %arg1, %c0_i32 : i32, i32, i32
  }
  func.func @transform_1(%arg0: i32, %arg1: i32) -> (i32, i32, i32) {
    %c0_i32 = arith.constant 0 : i32
    %c0_i32_0 = arith.constant 0 : i32
    return %arg0, %arg1, %c0_i32 : i32, i32, i32
  }
  func.func @transform_2(%arg0: i32, %arg1: i32) -> (i32, i32, i32) {
    %c0_i32 = arith.constant 0 : i32
    %c0_i32_0 = arith.constant 0 : i32
    %c0_i32_1 = arith.constant 0 : i32
    return %arg0, %c0_i32, %c0_i32_0 : i32, i32, i32
  }
  func.func @transform_3(%arg0: i32, %arg1: i32) -> (i32, i32) {
    %c0_i32 = arith.constant 0 : i32
    %c0_i32_0 = arith.constant 0 : i32
    %c0_i32_1 = arith.constant 0 : i32
    return %c0_i32, %c0_i32_0 : i32, i32
  }
  func.func @transform_4(%arg0: i32, %arg1: i32) -> (i32, i32) {
    %c0_i32 = arith.constant 0 : i32
    %c0_i32_0 = arith.constant 0 : i32
    %c0_i32_1 = arith.constant 0 : i32
    return %c0_i32, %c0_i32_0 : i32, i32
  }
  func.func @transform_5(%arg0: i32, %arg1: i32) -> (i32, i32) {
    %c0_i32 = arith.constant 0 : i32
    %c0_i32_0 = arith.constant 0 : i32
    %c0_i32_1 = arith.constant 0 : i32
    return %c0_i32, %c0_i32_0 : i32, i32
  }
  func.func @transform_6(%arg0: i32, %arg1: i32) -> (i32, i32) {
    %c0_i32 = arith.constant 0 : i32
    %c0_i32_0 = arith.constant 0 : i32
    %c0_i32_1 = arith.constant 0 : i32
    return %c0_i32, %c0_i32_0 : i32, i32
  }
  func.func @transform_7(%arg0: i32, %arg1: i32) -> (i32, i32, i32) {
    %c0_i32 = arith.constant 0 : i32
    %c0_i32_0 = arith.constant 0 : i32
    return %arg0, %arg1, %c0_i32 : i32, i32, i32
  }
}

</mosaic_0001>

<llo_original>
// kernel: tpu_custom_call.1
$region0: #{tpu_custom_call.1}
  #allocation0 [shape = 'u32[]', space=smem, size = 0x4, offset = 0x4, fixed_abs, tag = 'smem constant byte address 0x4 - core index']
  #allocation1 [shape = 'u32[144,128]{1,0:T(1,128)}', space=vmem, size = 0x12000, scoped, tag = 'internal scratch']
  %s0 = inlined_call_operand.vmem [shape: s32[2,16,4], index: 0, kind: input, shape index: {}]
  %s1 = inlined_call_operand.vmem [shape: f32[2,16,4], index: 1, kind: input, shape index: {}]
  %s2 = inlined_call_operand.vmem [shape: bf16[2,256,4], index: 2, kind: input, shape index: {}]
  %s3 = inlined_call_operand.vmem [shape: bf16[4,128], index: 3, kind: input, shape index: {}]
  %s4 = inlined_call_operand.vmem [shape: f32[1,128], index: 4, kind: input, shape index: {}]
  %s5 = inlined_call_operand.vmem [shape: bf16[32,128], index: 5, kind: input, shape index: {}]
  %s6 = inlined_call_operand.vmem [shape: f32[1,128], index: 6, kind: input, shape index: {}]
  %s7 = inlined_call_operand.hbm [shape: f32[2,16,128], index: 7, kind: output, shape index: {}]
  %s8 = sld [smem:[#allocation0]]
  $region61: #{tpu_custom_call.1} parent=0
    _
  %s10 = ssub.s32 1, %s8
  %s11 = scalar_select 0, %s10, %s8
  $region1: #{tpu_custom_call.1} parent=0
    #allocation2 [shape = 'u8[16384]{0}', space=vmem, size = 0x4000, scoped, tag = 'output window, operand 0']
    #allocation3 [shape = 's32[2]{0}', space=sflag, size = 0x8, scoped, tag = 'scoped memory for tpu_custom_call.1']
    %12 = vsyncpa [#allocation3], 0
    %s13 = scalar_lea.sflag [#allocation3], 1
    %14 = vsyncpa %s13, 0
    loop: start=0, step=1, limit=4
    $region2: #{tpu_custom_call.1} parent=1 // loop_pre_header
      _
    $region3: #{tpu_custom_call.1} parent=1 // loop_header
      %s16 = sphi 0, %s20
      %p17 = scmp.ge.s32.totalorder %s16, 4
      %s23 = sphi 0, %s35
      %s24 = sphi 0, %s31
      %s25 = sphi 0, %s23
      %s26 = sphi 0, %s24
      %s27 = sphi 0, %s25
      %s28 = sphi 0, %s26
      %s40 = sphi 0, %s42
      %s43 = sphi 0, %s40
      %s44 = sphi 0, %s43
      %s60 = sphi 0, %s44
      %s68 = sphi 0, %s70
      %s71 = sphi 0, %s68
      %s72 = sphi 0, %s71
      %s88 = sphi 0, %s72
      %s94 = sphi 0, %s96
      %s97 = sphi 0, %s94
      %s98 = sphi 0, %s97
      %s114 = sphi 0, %s98
      %s118 = sphi 0, %s118
      %s120 = sphi 0, %s118
      %s121 = sphi 0, %s120
      %s135 = sphi 0, %s121
      %s139 = sphi 0, %s139
      %s141 = sphi 0, %s139
      %s142 = sphi 0, %s141
      %s156 = sphi 0, %s142
      %s160 = sphi 0, %s160
      %s162 = sphi 0, %s160
      %s163 = sphi 0, %s162
      %s177 = sphi 0, %s163
      %s181 = sphi 0, %s181
      %s183 = sphi 0, %s181
      %s184 = sphi 0, %s183
      %s198 = sphi 0, %s184
      %s206 = sphi 0, %s208
      %s209 = sphi 0, %s206
      %s210 = sphi 0, %s209
      %s226 = sphi 0, %s210
    $region4: #{tpu_custom_call.1} parent=1 // loop_header_branch
      %19 = sbr.rel (%p17) target = $region8
    $region5: #{tpu_custom_call.1} parent=1 // loop_body
      %s21 = ssub.s32 %s16, 1
      %s22 = ssub.s32 %s16, 2
      %s29 = sadd.s32 1, %s24
      %p30 = scmp.ge.s32.totalorder %s29, 1
      %s31 = scalar_select %p30, 0, %s29
      %s32 = sadd.s32 1, %s23
      %s33 = scalar_select %p30, %s32, %s23
      %p34 = scmp.ge.s32.totalorder %s33, 2
      %s35 = scalar_select %p34, 0, %s33
      %s36 = ssub.s32 %s23, %s35
      %s37 = ssub.s32 %s24, %s31
      %s38 = sor.u32 %s36, %s37
      %p39 = scmp.eq.s32.totalorder %s38, 0
      %s41 = sadd.s32 %s40, 1
      %s42 = scalar_select %p39, %s40, %s41
      %p45 = pneg %p39
      %p46 = scmp.eq.s32.totalorder %s16, 1
      %p47 = por %p45, %p46
      %p48 = scmp.ne.s32.totalorder %s40, %s43
      %p49 = scmp.eq.s32.totalorder %s16, 0
      %p50 = por %p48, %p49
      %p51 = scmp.ne.s32.totalorder %s40, %s43
      %p52 = scmp.eq.s32.totalorder %s21, 1
      %p53 = por %p51, %p52
      %p54 = scmp.ne.s32.totalorder %s43, %s44
      %p55 = scmp.eq.s32.totalorder %s21, 0
      %p56 = por %p54, %p55
      %p57 = scmp.ne.s32.totalorder %s43, %s44
      %p58 = scmp.eq.s32.totalorder %s22, 1
      %p59 = por %p57, %p58
      %p61 = scmp.ne.s32.totalorder %s44, %s60
      %p62 = scmp.eq.s32.totalorder %s22, 0
      %p63 = por %p61, %p62
      %s64 = ssub.s32 %s23, %s35
      %s65 = ssub.s32 %s24, %s31
      %s66 = sor.u32 %s64, %s65
      %p67 = scmp.eq.s32.totalorder %s66, 0
      %s69 = sadd.s32 %s68, 1
      %s70 = scalar_select %p67, %s68, %s69
      %p73 = pneg %p67
      %p74 = scmp.eq.s32.totalorder %s16, 1
      %p75 = por %p73, %p74
      %p76 = scmp.ne.s32.totalorder %s68, %s71
      %p77 = scmp.eq.s32.totalorder %s16, 0
      %p78 = por %p76, %p77
      %p79 = scmp.ne.s32.totalorder %s68, %s71
      %p80 = scmp.eq.s32.totalorder %s21, 1
      %p81 = por %p79, %p80
      %p82 = scmp.ne.s32.totalorder %s71, %s72
      %p83 = scmp.eq.s32.totalorder %s21, 0
      %p84 = por %p82, %p83
      %p85 = scmp.ne.s32.totalorder %s71, %s72
      %p86 = scmp.eq.s32.totalorder %s22, 1
      %p87 = por %p85, %p86
      %p89 = scmp.ne.s32.totalorder %s72, %s88
      %p90 = scmp.eq.s32.totalorder %s22, 0
      %p91 = por %p89, %p90
      %s92 = ssub.s32 %s23, %s35
      %p93 = scmp.eq.s32.totalorder %s92, 0
      %s95 = sadd.s32 %s94, 1
      %s96 = scalar_select %p93, %s94, %s95
      %p99 = pneg %p93
      %p100 = scmp.eq.s32.totalorder %s16, 1
      %p101 = por %p99, %p100
      %p102 = scmp.ne.s32.totalorder %s94, %s97
      %p103 = scmp.eq.s32.totalorder %s16, 0
      %p104 = por %p102, %p103
      %p105 = scmp.ne.s32.totalorder %s94, %s97
      %p106 = scmp.eq.s32.totalorder %s21, 1
      %p107 = por %p105, %p106
      %p108 = scmp.ne.s32.totalorder %s97, %s98
      %p109 = scmp.eq.s32.totalorder %s21, 0
      %p110 = por %p108, %p109
      %p111 = scmp.ne.s32.totalorder %s97, %s98
      %p112 = scmp.eq.s32.totalorder %s22, 1
      %p113 = por %p111, %p112
      %p115 = scmp.ne.s32.totalorder %s98, %s114
      %p116 = scmp.eq.s32.totalorder %s22, 0
      %p117 = por %p115, %p116
      %s119 = sadd.s32 %s118, 1
      %p122 = scmp.eq.s32.totalorder %s16, 1
      %p123 = scmp.ne.s32.totalorder %s118, %s120
      %p124 = scmp.eq.s32.totalorder %s16, 0
      %p125 = por %p123, %p124
      %p126 = scmp.ne.s32.totalorder %s118, %s120
      %p127 = scmp.eq.s32.totalorder %s21, 1
      %p128 = por %p126, %p127
      %p129 = scmp.ne.s32.totalorder %s120, %s121
      %p130 = scmp.eq.s32.totalorder %s21, 0
      %p131 = por %p129, %p130
      %p132 = scmp.ne.s32.totalorder %s120, %s121
      %p133 = scmp.eq.s32.totalorder %s22, 1
      %p134 = por %p132, %p133
      %p136 = scmp.ne.s32.totalorder %s121, %s135
      %p137 = scmp.eq.s32.totalorder %s22, 0
      %p138 = por %p136, %p137
      %s140 = sadd.s32 %s139, 1
      %p143 = scmp.eq.s32.totalorder %s16, 1
      %p144 = scmp.ne.s32.totalorder %s139, %s141
      %p145 = scmp.eq.s32.totalorder %s16, 0
      %p146 = por %p144, %p145
      %p147 = scmp.ne.s32.totalorder %s139, %s141
      %p148 = scmp.eq.s32.totalorder %s21, 1
      %p149 = por %p147, %p148
      %p150 = scmp.ne.s32.totalorder %s141, %s142
      %p151 = scmp.eq.s32.totalorder %s21, 0
      %p152 = por %p150, %p151
      %p153 = scmp.ne.s32.totalorder %s141, %s142
      %p154 = scmp.eq.s32.totalorder %s22, 1
      %p155 = por %p153, %p154
      %p157 = scmp.ne.s32.totalorder %s142, %s156
      %p158 = scmp.eq.s32.totalorder %s22, 0
      %p159 = por %p157, %p158
      %s161 = sadd.s32 %s160, 1
      %p164 = scmp.eq.s32.totalorder %s16, 1
      %p165 = scmp.ne.s32.totalorder %s160, %s162
      %p166 = scmp.eq.s32.totalorder %s16, 0
      %p167 = por %p165, %p166
      %p168 = scmp.ne.s32.totalorder %s160, %s162
      %p169 = scmp.eq.s32.totalorder %s21, 1
      %p170 = por %p168, %p169
      %p171 = scmp.ne.s32.totalorder %s162, %s163
      %p172 = scmp.eq.s32.totalorder %s21, 0
      %p173 = por %p171, %p172
      %p174 = scmp.ne.s32.totalorder %s162, %s163
      %p175 = scmp.eq.s32.totalorder %s22, 1
      %p176 = por %p174, %p175
      %p178 = scmp.ne.s32.totalorder %s163, %s177
      %p179 = scmp.eq.s32.totalorder %s22, 0
      %p180 = por %p178, %p179
      %s182 = sadd.s32 %s181, 1
      %p185 = scmp.eq.s32.totalorder %s16, 1
      %p186 = scmp.ne.s32.totalorder %s181, %s183
      %p187 = scmp.eq.s32.totalorder %s16, 0
      %p188 = por %p186, %p187
      %p189 = scmp.ne.s32.totalorder %s181, %s183
      %p190 = scmp.eq.s32.totalorder %s21, 1
      %p191 = por %p189, %p190
      %p192 = scmp.ne.s32.totalorder %s183, %s184
      %p193 = scmp.eq.s32.totalorder %s21, 0
      %p194 = por %p192, %p193
      %p195 = scmp.ne.s32.totalorder %s183, %s184
      %p196 = scmp.eq.s32.totalorder %s22, 1
      %p197 = por %p195, %p196
      %p199 = scmp.ne.s32.totalorder %s184, %s198
      %p200 = scmp.eq.s32.totalorder %s22, 0
      %p201 = por %p199, %p200
      %s202 = ssub.s32 %s23, %s35
      %s203 = ssub.s32 %s24, %s31
      %s204 = sor.u32 %s202, %s203
      %p205 = scmp.eq.s32.totalorder %s204, 0
      %s207 = sadd.s32 %s206, 1
      %s208 = scalar_select %p205, %s206, %s207
      %p211 = pneg %p205
      %p212 = scmp.eq.s32.totalorder %s16, 1
      %p213 = por %p211, %p212
      %p214 = scmp.ne.s32.totalorder %s206, %s209
      %p215 = scmp.eq.s32.totalorder %s16, 0
      %p216 = por %p214, %p215
      %p217 = scmp.ne.s32.totalorder %s206, %s209
      %p218 = scmp.eq.s32.totalorder %s21, 1
      %p219 = por %p217, %p218
      %p220 = scmp.ne.s32.totalorder %s209, %s210
      %p221 = scmp.eq.s32.totalorder %s21, 0
      %p222 = por %p220, %p221
      %p223 = scmp.ne.s32.totalorder %s209, %s210
      %p224 = scmp.eq.s32.totalorder %s22, 1
      %p225 = por %p223, %p224
      %p227 = scmp.ne.s32.totalorder %s210, %s226
      %p228 = scmp.eq.s32.totalorder %s22, 0
      %p229 = por %p227, %p228
      %p230 = scmp.le.s32.totalorder 1, %s16
      %p231 = scmp.lt.s32.totalorder %s16, 3
      %p232 = pnand %p230, %p231
      %p233 = pneg %p232
      // Predicated region
      $region9: #{tpu_custom_call.1} parent=5 // pred_check
        _
      $region10: #{tpu_custom_call.1} parent=5 // pred_check_branch
        %235 = sbr.rel (%p232) target = $region12
      $region11: #{tpu_custom_call.1} parent=5 // pred_region
        %s236 = ssub.s32 %s16, 1
        // Predicated region
        $region13: #{tpu_custom_call.1} parent=11 // pred_check
          %p237 = pneg %p131
        $region14: #{tpu_custom_call.1} parent=11 // pred_check_branch
          %239 = sbr.rel (%p237) target = $region16
        $region15: #{tpu_custom_call.1} parent=11 // pred_region
          _
        $region16: #{tpu_custom_call.1} parent=11 // pred_fallthru
          _
        // Predicated region
        $region17: #{tpu_custom_call.1} parent=11 // pred_check
          %p240 = pneg %p152
        $region18: #{tpu_custom_call.1} parent=11 // pred_check_branch
          %242 = sbr.rel (%p240) target = $region20
        $region19: #{tpu_custom_call.1} parent=11 // pred_region
          _
        $region20: #{tpu_custom_call.1} parent=11 // pred_fallthru
          _
        // Predicated region
        $region21: #{tpu_custom_call.1} parent=11 // pred_check
          %p243 = pneg %p173
        $region22: #{tpu_custom_call.1} parent=11 // pred_check_branch
          %245 = sbr.rel (%p243) target = $region24
        $region23: #{tpu_custom_call.1} parent=11 // pred_region
          _
        $region24: #{tpu_custom_call.1} parent=11 // pred_fallthru
          _
        // Predicated region
        $region25: #{tpu_custom_call.1} parent=11 // pred_check
          %p246 = pneg %p194
        $region26: #{tpu_custom_call.1} parent=11 // pred_check_branch
          %248 = sbr.rel (%p246) target = $region28
        $region27: #{tpu_custom_call.1} parent=11 // pred_region
          _
        $region28: #{tpu_custom_call.1} parent=11 // pred_fallthru
          _
      $region12: #{tpu_custom_call.1} parent=5 // pred_fallthru
        _
      %p249 = scmp.lt.s32.totalorder %s16, 2
      // Predicated region
      $region29: #{tpu_custom_call.1} parent=5 // pred_check
        %p250 = pneg %p249
      $region30: #{tpu_custom_call.1} parent=5 // pred_check_branch
        %252 = sbr.rel (%p250) target = $region32
      $region31: #{tpu_custom_call.1} parent=5 // pred_region
        // Predicated region
        $region33: #{tpu_custom_call.1} parent=31 // pred_check
          %p253 = pneg %p50
        $region34: #{tpu_custom_call.1} parent=31 // pred_check_branch
          %255 = sbr.rel (%p253) target = $region36
        $region35: #{tpu_custom_call.1} parent=31 // pred_region
          %s256 = smul.u32 2, %s24
          %p257 = scmp.lt.s32.totalorder %s23, 1
          %s258 = scalar_select %p257, %s23, 1
          %p259 = scmp.lt.s32.totalorder %s256, 1
          %s260 = scalar_select %p259, %s256, 1
          %s261 = smul.addr %s258, 2
          %s262 = sadd.s32 %s260, %s261
          %s263 = smul.addr %s262, 8
          %s264 = scalar_lea.vmem %s0, %s263
          %s265 = smul.u32 2, %s24
        $region36: #{tpu_custom_call.1} parent=31 // pred_fallthru
          _
        // Predicated region
        $region37: #{tpu_custom_call.1} parent=31 // pred_check
          %p266 = pneg %p78
        $region38: #{tpu_custom_call.1} parent=31 // pred_check_branch
          %268 = sbr.rel (%p266) target = $region40
        $region39: #{tpu_custom_call.1} parent=31 // pred_region
          %s269 = smul.u32 2, %s24
          %p270 = scmp.lt.s32.totalorder %s23, 1
          %s271 = scalar_select %p270, %s23, 1
          %p272 = scmp.lt.s32.totalorder %s269, 1
          %s273 = scalar_select %p272, %s269, 1
          %s274 = smul.addr %s271, 2
          %s275 = sadd.s32 %s273, %s274
          %s276 = smul.addr %s275, 8
          %s277 = scalar_lea.vmem %s1, %s276
          %s278 = smul.u32 2, %s24
        $region40: #{tpu_custom_call.1} parent=31 // pred_fallthru
          _
        // Predicated region
        $region41: #{tpu_custom_call.1} parent=31 // pred_check
          %p279 = pneg %p104
        $region42: #{tpu_custom_call.1} parent=31 // pred_check_branch
          %281 = sbr.rel (%p279) target = $region44
        $region43: #{tpu_custom_call.1} parent=31 // pred_region
          %p282 = scmp.lt.s32.totalorder %s23, 1
          %s283 = scalar_select %p282, %s23, 1
          %s284 = smul.addr %s283, 32
          %s285 = smul.addr %s284, 4
          %s286 = scalar_lea.vmem %s2, %s285
        $region44: #{tpu_custom_call.1} parent=31 // pred_fallthru
          _
      $region32: #{tpu_custom_call.1} parent=5 // pred_fallthru
        _
      %p287 = scmp.le.s32.totalorder 1, %s16
      %p288 = scmp.lt.s32.totalorder %s16, 3
      %p289 = pnand %p287, %p288
      %p290 = pneg %p289
      // Predicated region
      $region45: #{tpu_custom_call.1} parent=5 // pred_check
        _
      $region46: #{tpu_custom_call.1} parent=5 // pred_check_branch
        %292 = sbr.rel (%p289) target = $region48
      $region47: #{tpu_custom_call.1} parent=5 // pred_region
        %s293 = ssub.s32 %s16, 1
        %s294 = smul.u32 2, %s26
        %p295 = scmp.lt.s32.totalorder %s25, 1
        %s296 = scalar_select %p295, %s25, 1
        %p297 = scmp.lt.s32.totalorder %s294, 1
        %s298 = scalar_select %p297, %s294, 1
        %s299 = smul.addr %s296, 2
        %s300 = sadd.s32 %s298, %s299
        %s301 = smul.addr %s300, 8
        %s302 = scalar_lea.vmem %s0, %s301
        %p303 = pneg %p56
        %p304 = pneg %p53
        %s305 = smul.u32 2, %s26
        %p306 = scmp.lt.s32.totalorder %s25, 1
        %s307 = scalar_select %p306, %s25, 1
        %p308 = scmp.lt.s32.totalorder %s305, 1
        %s309 = scalar_select %p308, %s305, 1
        %s310 = smul.addr %s307, 2
        %s311 = sadd.s32 %s309, %s310
        %s312 = smul.addr %s311, 8
        %s313 = scalar_lea.vmem %s1, %s312
        %p314 = pneg %p84
        %p315 = pneg %p81
        %p316 = scmp.lt.s32.totalorder %s25, 1
        %s317 = scalar_select %p316, %s25, 1
        %s318 = smul.addr %s317, 32
        %s319 = smul.addr %s318, 4
        %s320 = scalar_lea.vmem %s2, %s319
        %p321 = pneg %p110
        %p322 = pneg %p107
        %p323 = pneg %p131
        %p324 = pneg %p128
        %p325 = pneg %p152
        %p326 = pneg %p149
        %p327 = pneg %p173
        %p328 = pneg %p170
        %p329 = pneg %p194
        %p330 = pneg %p191
        %p331 = pneg %p222
        %p332 = pneg %p219
        %s333 = sand.u32 %s209, 1
        %s334 = scalar_lea.sflag [#allocation3], %s333
        %s335 = sand.u32 %s209, 1
        %s336 = smul.addr %s335, 16
        %s337 = scalar_lea.vmem [#allocation2], %s336
        %s338 = smul.u32 2, %s26
        %p339 = scmp.lt.s32.totalorder %s25, 1
        %s340 = scalar_select %p339, %s25, 1
        %p341 = scmp.lt.s32.totalorder %s338, 1
        %s342 = scalar_select %p341, %s338, 1
        %s343 = smul.addr %s340, 2
        %s344 = sadd.s32 %s342, %s343
        %s345 = smul.addr %s344, 8
        %s346 = scalar_lea.vmem %s0, %s345
        %s347 = smul.u32 2, %s26
        %s348 = smul.u32 2, %s26
        %p349 = scmp.lt.s32.totalorder %s25, 1
        %s350 = scalar_select %p349, %s25, 1
        %p351 = scmp.lt.s32.totalorder %s348, 1
        %s352 = scalar_select %p351, %s348, 1
        %s353 = smul.addr %s350, 2
        %s354 = sadd.s32 %s352, %s353
        %s355 = smul.addr %s354, 8
        %s356 = scalar_lea.vmem %s1, %s355
        %s357 = smul.u32 2, %s26
        %p358 = scmp.lt.s32.totalorder %s25, 1
        %s359 = scalar_select %p358, %s25, 1
        %s360 = smul.addr %s359, 32
        %s361 = smul.addr %s360, 4
        %s362 = scalar_lea.vmem %s2, %s361
        %s363 = smul.u32 2, %s26
        %v365 = vld [vmem:[%s346] sm:$0xff]
        %v366 = vld [vmem:[%s346 + $0x8] sm:$0xff]
        %v367 = vld [vmem:[%s356] sm:$0xff]
        %v368 = vld [vmem:[%s356 + $0x8] sm:$0xff]
        %v369 = vlaneseq
        %v370 = vand.u32 %v369, 127
        %v371 = vadd.s32 %v370, 128
        %372 = vset.pattern.permute.xlu0 0
        %373 = vperm.xlu0 %372, %v365
        %v374 = vpop.permute.xlu0 %373
        %375 = vset.pattern.permute.xlu0 0
        %376 = vperm.xlu0 %375, %v366
        %v377 = vpop.permute.xlu0 %376
        %vm378 = vcmp.eq.s32.totalorder %v374, %v370
        %vm379 = vcmp.eq.s32.totalorder %v374, %v371
        %vm380 = vcmp.eq.s32.totalorder %v377, %v370
        %vm381 = vcmp.eq.s32.totalorder %v377, %v371
        %383 = vset.pattern.permute.xlu0 0
        %384 = vperm.xlu0 %383, %v367
        %v385 = vpop.permute.xlu0 %384
        %388 = vset.pattern.permute.xlu0 0
        %389 = vperm.xlu0 %388, %v368
        %v390 = vpop.permute.xlu0 %389
        %v392 = vsel %vm378, %v385, 0.0
        %v393 = vsel %vm379, %v385, 0.0
        %v394 = vsel %vm380, %v390, 0.0
        %v395 = vsel %vm381, %v390, 0.0
        %v396 = vadd.f32 %v392, 0.0
        %v397 = vadd.f32 %v393, 0.0
        %v398 = vadd.f32 %v394, 0.0
        %v399 = vadd.f32 %v395, 0.0
        %400 = vset.pattern.permute.xlu0 1
        %401 = vperm.xlu0 %400, %v365
        %v402 = vpop.permute.xlu0 %401
        %403 = vset.pattern.permute.xlu0 1
        %404 = vperm.xlu0 %403, %v366
        %v405 = vpop.permute.xlu0 %404
        %vm406 = vcmp.eq.s32.totalorder %v402, %v370
        %vm407 = vcmp.eq.s32.totalorder %v402, %v371
        %vm408 = vcmp.eq.s32.totalorder %v405, %v370
        %vm409 = vcmp.eq.s32.totalorder %v405, %v371
        %410 = vset.pattern.permute.xlu0 1
        %411 = vperm.xlu0 %410, %v367
        %v412 = vpop.permute.xlu0 %411
        %414 = vset.pattern.permute.xlu0 1
        %415 = vperm.xlu0 %414, %v368
        %v416 = vpop.permute.xlu0 %415
        %v418 = vsel %vm406, %v412, 0.0
        %v419 = vsel %vm407, %v412, 0.0
        %v420 = vsel %vm408, %v416, 0.0
        %v421 = vsel %vm409, %v416, 0.0
        %v422 = vadd.f32 %v396, %v418
        %v423 = vadd.f32 %v397, %v419
        %v424 = vadd.f32 %v398, %v420
        %v425 = vadd.f32 %v399, %v421
        %426 = vset.pattern.permute.xlu0 2
        %427 = vperm.xlu0 %426, %v365
        %v428 = vpop.permute.xlu0 %427
        %429 = vset.pattern.permute.xlu0 2
        %430 = vperm.xlu0 %429, %v366
        %v431 = vpop.permute.xlu0 %430
        %vm432 = vcmp.eq.s32.totalorder %v428, %v370
        %vm433 = vcmp.eq.s32.totalorder %v428, %v371
        %vm434 = vcmp.eq.s32.totalorder %v431, %v370
        %vm435 = vcmp.eq.s32.totalorder %v431, %v371
        %436 = vset.pattern.permute.xlu0 2
        %437 = vperm.xlu0 %436, %v367
        %v438 = vpop.permute.xlu0 %437
        %440 = vset.pattern.permute.xlu0 2
        %441 = vperm.xlu0 %440, %v368
        %v442 = vpop.permute.xlu0 %441
        %v444 = vsel %vm432, %v438, 0.0
        %v445 = vsel %vm433, %v438, 0.0
        %v446 = vsel %vm434, %v442, 0.0
        %v447 = vsel %vm435, %v442, 0.0
        %v448 = vadd.f32 %v422, %v444
        %v449 = vadd.f32 %v423, %v445
        %v450 = vadd.f32 %v424, %v446
        %v451 = vadd.f32 %v425, %v447
        %452 = vset.pattern.permute.xlu0 3
        %453 = vperm.xlu0 %452, %v365
        %v454 = vpop.permute.xlu0 %453
        %455 = vset.pattern.permute.xlu0 3
        %456 = vperm.xlu0 %455, %v366
        %v457 = vpop.permute.xlu0 %456
        %vm458 = vcmp.eq.s32.totalorder %v454, %v370
        %vm459 = vcmp.eq.s32.totalorder %v454, %v371
        %vm460 = vcmp.eq.s32.totalorder %v457, %v370
        %vm461 = vcmp.eq.s32.totalorder %v457, %v371
        %462 = vset.pattern.permute.xlu0 3
        %463 = vperm.xlu0 %462, %v367
        %v464 = vpop.permute.xlu0 %463
        %466 = vset.pattern.permute.xlu0 3
        %467 = vperm.xlu0 %466, %v368
        %v468 = vpop.permute.xlu0 %467
        %v470 = vsel %vm458, %v464, 0.0
        %v471 = vsel %vm459, %v464, 0.0
        %v472 = vsel %vm460, %v468, 0.0
        %v473 = vsel %vm461, %v468, 0.0
        %v474 = vadd.f32 %v448, %v470
        %v475 = vadd.f32 %v449, %v471
        %v476 = vadd.f32 %v450, %v472
        %v477 = vadd.f32 %v451, %v473
        %v478 = vld [vmem:[%s362] sm:$0xf]
        %v479 = vld [vmem:[%s362 + $0x4] sm:$0xf]
        %v480 = vld [vmem:[%s362 + $0x8] sm:$0xf]
        %v481 = vld [vmem:[%s362 + $0xc] sm:$0xf]
        %v482 = vld [vmem:[%s362 + $0x10] sm:$0xf]
        %v483 = vld [vmem:[%s362 + $0x14] sm:$0xf]
        %v484 = vld [vmem:[%s362 + $0x18] sm:$0xf]
        %v485 = vld [vmem:[%s362 + $0x1c] sm:$0xf]
        %v486 = vld [vmem:[%s362 + $0x20] sm:$0xf]
        %v487 = vld [vmem:[%s362 + $0x24] sm:$0xf]
        %v488 = vld [vmem:[%s362 + $0x28] sm:$0xf]
        %v489 = vld [vmem:[%s362 + $0x2c] sm:$0xf]
        %v490 = vld [vmem:[%s362 + $0x30] sm:$0xf]
        %v491 = vld [vmem:[%s362 + $0x34] sm:$0xf]
        %v492 = vld [vmem:[%s362 + $0x38] sm:$0xf]
        %v493 = vld [vmem:[%s362 + $0x3c] sm:$0xf]
        %v494 = vld [vmem:[%s362 + $0x40] sm:$0xf]
        %v495 = vld [vmem:[%s362 + $0x44] sm:$0xf]
        %v496 = vld [vmem:[%s362 + $0x48] sm:$0xf]
        %v497 = vld [vmem:[%s362 + $0x4c] sm:$0xf]
        %v498 = vld [vmem:[%s362 + $0x50] sm:$0xf]
        %v499 = vld [vmem:[%s362 + $0x54] sm:$0xf]
        %v500 = vld [vmem:[%s362 + $0x58] sm:$0xf]
        %v501 = vld [vmem:[%s362 + $0x5c] sm:$0xf]
        %v502 = vld [vmem:[%s362 + $0x60] sm:$0xf]
        %v503 = vld [vmem:[%s362 + $0x64] sm:$0xf]
        %v504 = vld [vmem:[%s362 + $0x68] sm:$0xf]
        %v505 = vld [vmem:[%s362 + $0x6c] sm:$0xf]
        %v506 = vld [vmem:[%s362 + $0x70] sm:$0xf]
        %v507 = vld [vmem:[%s362 + $0x74] sm:$0xf]
        %v508 = vld [vmem:[%s362 + $0x78] sm:$0xf]
        %v509 = vld [vmem:[%s362 + $0x7c] sm:$0xf]
        %v510 = vpack.c.bf16 %v476, %v474
        %v511 = vpack.c.bf16 %v477, %v475
        %v544 = vunpack.c.l.b16 %v478
        %v545 = vunpack.c.l.b16 %v479
        %v546 = vunpack.c.l.b16 %v480
        %v547 = vunpack.c.l.b16 %v481
        %v548 = vunpack.c.l.b16 %v482
        %v549 = vunpack.c.l.b16 %v483
        %v550 = vunpack.c.l.b16 %v484
        %v551 = vunpack.c.l.b16 %v485
        %v552 = vunpack.c.l.b16 %v486
        %v553 = vunpack.c.l.b16 %v487
        %v554 = vunpack.c.l.b16 %v488
        %v555 = vunpack.c.l.b16 %v489
        %v556 = vunpack.c.l.b16 %v490
        %v557 = vunpack.c.l.b16 %v491
        %v558 = vunpack.c.l.b16 %v492
        %v559 = vunpack.c.l.b16 %v493
        %v560 = vunpack.c.l.b16 %v494
        %v561 = vunpack.c.l.b16 %v495
        %v562 = vunpack.c.l.b16 %v496
        %v563 = vunpack.c.l.b16 %v497
        %v564 = vunpack.c.l.b16 %v498
        %v565 = vunpack.c.l.b16 %v499
        %v566 = vunpack.c.l.b16 %v500
        %v567 = vunpack.c.l.b16 %v501
        %v568 = vunpack.c.l.b16 %v502
        %v569 = vunpack.c.l.b16 %v503
        %v570 = vunpack.c.l.b16 %v504
        %v571 = vunpack.c.l.b16 %v505
        %v572 = vunpack.c.l.b16 %v506
        %v573 = vunpack.c.l.b16 %v507
        %v574 = vunpack.c.l.b16 %v508
        %v575 = vunpack.c.l.b16 %v509
        %v576 = vpack.c.b16 %v545, %v544
        %v577 = vpack.c.b16 %v547, %v546
        %v578 = vpack.c.b16 %v549, %v548
        %v579 = vpack.c.b16 %v551, %v550
        %v580 = vpack.c.b16 %v553, %v552
        %v581 = vpack.c.b16 %v555, %v554
        %v582 = vpack.c.b16 %v557, %v556
        %v583 = vpack.c.b16 %v559, %v558
        %v584 = vpack.c.b16 %v561, %v560
        %v585 = vpack.c.b16 %v563, %v562
        %v586 = vpack.c.b16 %v565, %v564
        %v587 = vpack.c.b16 %v567, %v566
        %v588 = vpack.c.b16 %v569, %v568
        %v589 = vpack.c.b16 %v571, %v570
        %v590 = vpack.c.b16 %v573, %v572
        %v591 = vpack.c.b16 %v575, %v574
        %608 = vmatprep.subr.bf16.mxu0 0
        %609 = vmatpush1.bf16.msra.mxu0 %v576
        %610 = vmatprep.subr.bf16.mxu0 0
        %611 = vmatpush1.bf16.msra.mxu0 %v577
        %612 = vmatprep.subr.bf16.mxu0 0
        %613 = vmatpush1.bf16.msra.mxu0 %v578
        %614 = vmatprep.subr.bf16.mxu0 0
        %615 = vmatpush1.bf16.msra.mxu0 %v579
        %616 = vmatprep.subr.bf16.mxu0 0
        %617 = vmatpush1.bf16.msra.mxu0 %v580
        %618 = vmatprep.subr.bf16.mxu0 0
        %619 = vmatpush1.bf16.msra.mxu0 %v581
        %620 = vmatprep.subr.bf16.mxu0 0
        %621 = vmatpush1.bf16.msra.mxu0 %v582
        %622 = vmatprep.subr.bf16.mxu0 0
        %623 = vmatpush1.bf16.msra.mxu0 %v583
        %624 = vmatprep.subr.bf16.mxu0 0
        %625 = vmatpush1.bf16.msra.mxu0 %v584
        %626 = vmatprep.subr.bf16.mxu0 0
        %627 = vmatpush1.bf16.msra.mxu0 %v585
        %628 = vmatprep.subr.bf16.mxu0 0
        %629 = vmatpush1.bf16.msra.mxu0 %v586
        %630 = vmatprep.subr.bf16.mxu0 0
        %631 = vmatpush1.bf16.msra.mxu0 %v587
        %632 = vmatprep.subr.bf16.mxu0 0
        %633 = vmatpush1.bf16.msra.mxu0 %v588
        %634 = vmatprep.subr.bf16.mxu0 0
        %635 = vmatpush1.bf16.msra.mxu0 %v589
        %636 = vmatprep.subr.bf16.mxu0 0
        %637 = vmatpush1.bf16.msra.mxu0 %v590
        %638 = vmatprep.subr.bf16.mxu0 0
        %639 = vmatpush1.bf16.msra.mxu0 %v591
        %640 = vmatprep.mubr.bf16.mxu0 %v511
        %641 = vmatmul.mubr.bf16.gmra.mrb[0].mxu0 %v510
        %v642 = vpop.f32.mrb[0].mxu0
        %v643 = vadd.f32 0.0, %v642
        %v644 = vpop.f32.mrb[0].mxu0
        %v645 = vpop.f32.mrb[0].mxu0
        %v646 = vadd.f32 0.0, %v645
        %v647 = vpop.f32.mrb[0].mxu0
        %648 = vdwg.mxu0
        %v649 = vpack.c.bf16 %v646, %v643
        %v650 = vld [vmem:[%s3] sm:$0x3]
        %v651 = vld [vmem:[%s4] sm:$0x1]
        %v653 = vlaneseq
        %v654 = vshrl.u32 %v653, 7
        %v655 = vsub.s32 0, %v654
        %v656 = vrot.slane %v651, %v655
        %vm658 = vcmask 31744
        %v660 = vsel %vm658, %v649, 0
        %vm662 = vcmask 1041408
        %v664 = vsel %vm662, %v650, 0
        %666 = vmatprep.subr.bf16.mxu0 0
        %667 = vmatpush1.bf16.msra.mxu0 %v664
        %668 = vmatprep.subr.bf16.mxu0 0
        %669 = vmatpush1.bf16.msra.mxu0 0
        %670 = vmatprep.subr.bf16.mxu0 0
        %671 = vmatpush1.bf16.msra.mxu0 0
        %672 = vmatprep.subr.bf16.mxu0 0
        %673 = vmatpush1.bf16.msra.mxu0 0
        %674 = vmatprep.subr.bf16.mxu0 0
        %675 = vmatpush1.bf16.msra.mxu0 0
        %676 = vmatprep.subr.bf16.mxu0 0
        %677 = vmatpush1.bf16.msra.mxu0 0
        %678 = vmatprep.subr.bf16.mxu0 0
        %679 = vmatpush1.bf16.msra.mxu0 0
        %680 = vmatprep.subr.bf16.mxu0 0
        %681 = vmatpush1.bf16.msra.mxu0 0
        %682 = vmatprep.subr.bf16.mxu0 0
        %683 = vmatpush1.bf16.msra.mxu0 0
        %684 = vmatprep.subr.bf16.mxu0 0
        %685 = vmatpush1.bf16.msra.mxu0 0
        %686 = vmatprep.subr.bf16.mxu0 0
        %687 = vmatpush1.bf16.msra.mxu0 0
        %688 = vmatprep.subr.bf16.mxu0 0
        %689 = vmatpush1.bf16.msra.mxu0 0
        %690 = vmatprep.subr.bf16.mxu0 0
        %691 = vmatpush1.bf16.msra.mxu0 0
        %692 = vmatprep.subr.bf16.mxu0 0
        %693 = vmatpush1.bf16.msra.mxu0 0
        %694 = vmatprep.subr.bf16.mxu0 0
        %695 = vmatpush1.bf16.msra.mxu0 0
        %696 = vmatprep.subr.bf16.mxu0 0
        %697 = vmatpush1.bf16.msra.mxu0 0
        %698 = vmatprep.mubr.bf16.mxu0 0
        %699 = vmatmul.mubr.bf16.gmra.mrb[0].mxu0 %v660
        %v700 = vpop.f32.mrb[0].mxu0
        %v701 = vadd.f32 %v656, %v700
        %v702 = vpop.f32.mrb[0].mxu0
        %v703 = vpop.f32.mrb[0].mxu0
        %v704 = vadd.f32 %v656, %v703
        %v705 = vpop.f32.mrb[0].mxu0
        %706 = vdwg.mxu0
        %v707 = vmax.f32 %v701, 0.0
        %v708 = vmax.f32 %v704, 0.0
        %v709 = vpack.c.bf16 %v708, %v707
        %v710 = vld [vmem:[%s5] sm:$0xf]
        %v711 = vld [vmem:[%s5 + $0x4] sm:$0xf]
        %v712 = vld [vmem:[%s5 + $0x8] sm:$0xf]
        %v713 = vld [vmem:[%s5 + $0xc] sm:$0xf]
        %v714 = vld [vmem:[%s6] sm:$0x1]
        %v716 = vlaneseq
        %v717 = vshrl.u32 %v716, 7
        %v718 = vsub.s32 0, %v717
        %v719 = vrot.slane %v714, %v718
        %v725 = vunpack.c.l.b16 %v710
        %v726 = vunpack.c.l.b16 %v711
        %v727 = vunpack.c.l.b16 %v712
        %v728 = vunpack.c.l.b16 %v713
        %v729 = vpack.c.b16 %v726, %v725
        %v730 = vpack.c.b16 %v728, %v727
        %vm733 = vcmask 261120
        %v735 = vsel %vm733, %v709, 0
        %737 = vmatprep.subr.bf16.mxu0 0
        %738 = vmatpush1.bf16.msra.mxu0 %v729
        %739 = vmatprep.subr.bf16.mxu0 0
        %740 = vmatpush1.bf16.msra.mxu0 %v730
        %741 = vmatprep.subr.bf16.mxu0 0
        %742 = vmatpush1.bf16.msra.mxu0 0
        %743 = vmatprep.subr.bf16.mxu0 0
        %744 = vmatpush1.bf16.msra.mxu0 0
        %745 = vmatprep.subr.bf16.mxu0 0
        %746 = vmatpush1.bf16.msra.mxu0 0
        %747 = vmatprep.subr.bf16.mxu0 0
        %748 = vmatpush1.bf16.msra.mxu0 0
        %749 = vmatprep.subr.bf16.mxu0 0
        %750 = vmatpush1.bf16.msra.mxu0 0
        %751 = vmatprep.subr.bf16.mxu0 0
        %752 = vmatpush1.bf16.msra.mxu0 0
        %753 = vmatprep.subr.bf16.mxu0 0
        %754 = vmatpush1.bf16.msra.mxu0 0
        %755 = vmatprep.subr.bf16.mxu0 0
        %756 = vmatpush1.bf16.msra.mxu0 0
        %757 = vmatprep.subr.bf16.mxu0 0
        %758 = vmatpush1.bf16.msra.mxu0 0
        %759 = vmatprep.subr.bf16.mxu0 0
        %760 = vmatpush1.bf16.msra.mxu0 0
        %761 = vmatprep.subr.bf16.mxu0 0
        %762 = vmatpush1.bf16.msra.mxu0 0
        %763 = vmatprep.subr.bf16.mxu0 0
        %764 = vmatpush1.bf16.msra.mxu0 0
        %765 = vmatprep.subr.bf16.mxu0 0
        %766 = vmatpush1.bf16.msra.mxu0 0
        %767 = vmatprep.subr.bf16.mxu0 0
        %768 = vmatpush1.bf16.msra.mxu0 0
        %769 = vmatprep.mubr.bf16.mxu0 0
        %770 = vmatmul.mubr.bf16.gmra.mrb[0].mxu0 %v735
        %v771 = vpop.f32.mrb[0].mxu0
        %v772 = vadd.f32 %v719, %v771
        %v773 = vpop.f32.mrb[0].mxu0
        %v774 = vpop.f32.mrb[0].mxu0
        %v775 = vadd.f32 %v719, %v774
        %v776 = vpop.f32.mrb[0].mxu0
        %777 = vdwg.mxu0
        %v778 = vmul.f32 %v772, %v772
        %v779 = vmul.f32 %v775, %v775
        %780 = vadd.xlane.f32.xlu0 %v778
        %v781 = vpop.xlane.xlu0 %780
        %782 = vadd.xlane.f32.xlu0 %v779
        %v783 = vpop.xlane.xlu0 %782
        %v784 = vrsqrt.pop %v781
        %v785 = vmul.f32 %v781, %v784
        %vm786 = vcmp.eq.f32.partialorder %v781, inf
        %v787 = vsel %vm786, %v781, %v785
        %vm788 = vcmp.eq.f32.partialorder %v781, 0.0
        %v789 = vand.u32 %v781, 2147483648
        %v790 = vsel %vm788, %v789, %v787
        %v791 = vrsqrt.pop %v783
        %v792 = vmul.f32 %v783, %v791
        %vm793 = vcmp.eq.f32.partialorder %v783, inf
        %v794 = vsel %vm793, %v783, %v792
        %vm795 = vcmp.eq.f32.partialorder %v783, 0.0
        %v796 = vand.u32 %v783, 2147483648
        %v797 = vsel %vm795, %v796, %v794
        %v798 = vadd.f32 %v790, 1e-07
        %v799 = vadd.f32 %v797, 1e-07
        %v800 = vrcp.pop %v798
        %v801 = vrcp.pop %v799
        %v802 = vmul.f32 %v798, %v800
        %v803 = vmul.f32 %v799, %v801
        %v804 = vsub.f32 2.0, %v802
        %v805 = vsub.f32 2.0, %v803
        %v806 = vmul.f32 %v800, %v804
        %v807 = vmul.f32 %v801, %v805
        %v808 = vmul.f32 %v772, %v806
        %v809 = vmul.f32 %v775, %v807
        %810 = vst [vmem:[%s337] sm:$0xff] %v808
        %811 = vst [vmem:[%s337 + $0x8] sm:$0xff] %v809
        %s812 = sand.u32 %s209, 1
        %s813 = scalar_lea.sflag [#allocation3], %s812
        %s814 = sand.u32 %s209, 1
        %s815 = smul.addr %s814, 16
        %s816 = scalar_lea.vmem [#allocation2], %s815
        // Predicated region
        $region49: #{tpu_custom_call.1} parent=47 // pred_check
          %p817 = pneg %p219
        $region50: #{tpu_custom_call.1} parent=47 // pred_check_branch
          %819 = sbr.rel (%p817) target = $region52
        $region51: #{tpu_custom_call.1} parent=47 // pred_region
          %s820 = smul.u32 2, %s26
          %s822 = ssub.s32 256, 256
          %823 = vsyncadd %s813, %s822
          %s824 = smul.addr %s25, 2
          %s825 = sadd.s32 %s820, %s824
          %s826 = smul.addr %s825, 128
          %s827 = scalar_lea.hbm %s7, %s826
          %s828 = sshll.u32 %s816, 4
          %s829 = int_to_ptr.vmem [resolvable:$true] %s828
          %834 = dma.vmem_to_hbm [thread:$0]  %s829, 256, %s827, %s813, 128, 128, 8
        $region52: #{tpu_custom_call.1} parent=47 // pred_fallthru
          _
      $region48: #{tpu_custom_call.1} parent=5 // pred_fallthru
        _
      %p835 = scmp.le.s32.totalorder 2, %s16
      // Predicated region
      $region53: #{tpu_custom_call.1} parent=5 // pred_check
        %p836 = pneg %p835
      $region54: #{tpu_custom_call.1} parent=5 // pred_check_branch
        %838 = sbr.rel (%p836) target = $region56
      $region55: #{tpu_custom_call.1} parent=5 // pred_region
        %s839 = ssub.s32 %s16, 2
        // Predicated region
        $region57: #{tpu_custom_call.1} parent=55 // pred_check
          %p840 = pneg %p225
        $region58: #{tpu_custom_call.1} parent=55 // pred_check_branch
          %842 = sbr.rel (%p840) target = $region60
        $region59: #{tpu_custom_call.1} parent=55 // pred_region
          %s843 = sand.u32 %s210, 1
          %s844 = scalar_lea.sflag [#allocation3], %s843
          %s845 = sand.u32 %s210, 1
          %s846 = smul.addr %s845, 16
          %s847 = scalar_lea.vmem [#allocation2], %s846
          %848 = dma.done %s844, 256
        $region60: #{tpu_custom_call.1} parent=55 // pred_fallthru
          _
      $region56: #{tpu_custom_call.1} parent=5 // pred_fallthru
        _
    $region6: #{tpu_custom_call.1} parent=1 // loop_footer
      %s20 = sadd.s32 1, %s16
    $region7: #{tpu_custom_call.1} parent=1 // loop_footer_branch
      %15 = sbr.rel target = $region3
    $region8: #{tpu_custom_call.1} parent=1 // loop_exit
      _
    %849 = vsyncpa [#allocation3], 1
    %s850 = scalar_lea.sflag [#allocation3], 1
    %851 = vsyncpa %s850, 1

</llo_original>
